<compile_context>
chip_gen: v5e
topology: v5e:2x2
jax: 0.10.0
libtpu: 0.0.40
codegen_flags: <defaults>
</compile_context>

<pallas_src>
import functools

import jax
import jax.numpy as jnp
import numpy as np
from jax.experimental import pallas as pl
from jax.experimental.pallas import tpu as pltpu


def _vmem_capacity_bytes():
    """Physical VMEM on this chip; conservative (v7x, 64 MiB) fallback."""
    try:
        return int(pltpu.get_tpu_info().vmem_capacity_bytes)
    except Exception:
        return 64 * 1024 * 1024


def _choose_tf(H, F, itemsize):
    """FFN tile so double-buffered w1/w3/w2 tiles use ~45% of this chip's VMEM."""
    cap = _vmem_capacity_bytes()
    budget = int(cap * 0.45)
    tf = budget // (6 * H * itemsize)        # 2 buffers x 3 weight tiles x H x tf
    tf = max(128, (tf // 128) * 128)
    tf = min(tf, F)
    while tf > 128 and F % tf != 0:
        tf -= 128
    if F % tf != 0:
        tf = F                                # small / odd F: take the whole thing
    return int(tf)


def _moe_kernel(flags_ref, x_ref, w1_ref, w3_ref, w2_ref, rw_ref, o_ref, acc_ref):
    i = pl.program_id(0)                      # token tile   (parallel)
    e = pl.program_id(1)                      # expert       (reduction)
    f = pl.program_id(2)                      # FFN tile     (reduction)
    n_e = pl.num_programs(1)
    n_f = pl.num_programs(2)

    @pl.when(jnp.logical_and(e == 0, f == 0))
    def _init():
        acc_ref[...] = jnp.zeros_like(acc_ref)

    # Skip experts that no token in this tile was routed to (decode / small batch).
    active = flags_ref[i * n_e + e] != 0

    @pl.when(active)
    def _compute():
        x = x_ref[...]                                                   # (tm, H)
        w_e = rw_ref[0]                                                  # (tm, 1) f32
        h1 = jnp.dot(x, w1_ref[0], preferred_element_type=jnp.float32)   # (tm, tf)
        h3 = jnp.dot(x, w3_ref[0], preferred_element_type=jnp.float32)   # (tm, tf)
        h = (h1 * jax.nn.sigmoid(h1)) * h3                               # SiLU gate
        # Routing weight applied on the small (tm, tf) tile BEFORE w2: with
        # F-tiling this is exactly once per expert, and it is much cheaper
        # than scaling the (tm, H) f32 output every grid step.
        h = (h * w_e).astype(x.dtype)
        acc_ref[...] += jnp.dot(h, w2_ref[0], preferred_element_type=jnp.float32)

    @pl.when(jnp.logical_and(e == n_e - 1, f == n_f - 1))
    def _finalize():
        o_ref[...] = acc_ref[...].astype(o_ref.dtype)


def mixtral_moe_pallas(x2d, w1, w3, w2, dense_w, *, tm, tf=None):
    """x2d: [T, H]; w1/w3: [E, H, F]; w2: [E, F, H]; dense_w: [T, E] f32."""
    T, H = x2d.shape
    E, _, F = w1.shape
    itemsize = jnp.dtype(x2d.dtype).itemsize

    assert tm % 8 == 0, "tm must be a multiple of 8 (sublane)"
    n_i = -(-T // tm)
    T_pad = n_i * tm
    if T_pad != T:                            # padded tokens get zero routing weight
        x2d = jnp.pad(x2d, ((0, T_pad - T), (0, 0)))
        dense_w = jnp.pad(dense_w, ((0, T_pad - T), (0, 0)))

    if tf is None:
        tf = _choose_tf(H, F, itemsize)
    assert F % tf == 0, "choose tf (multiple of 128) that divides F"
    n_f = F // tf

    # Per-(token-tile, expert) activity flags, flattened to 1-D for cheap SMEM.
    flags = (dense_w.reshape(n_i, tm, E) > 0).any(axis=1)
    flags = flags.reshape(-1).astype(jnp.int32)                 # [n_i * E]

    # Routing column in a [E, T, 1] layout so the per-expert (1, tm, 1) block
    # satisfies the (8, 128) blocking rules (last dim equals the full dim).
    rw = dense_w.T.reshape(E, T_pad, 1)

    # Size the scoped VMEM limit to the actual working set (double-buffered
    # tiles + f32 accumulator) with headroom, capped safely below physical.
    est = (2 * tm * H * itemsize          # x tile
           + 2 * 3 * H * tf * itemsize    # w1, w3, w2 tiles
           + 2 * tm * 4                   # routing column
           + 2 * tm * H * itemsize        # output tile
           + tm * H * 4)                  # f32 accumulator
    cap = _vmem_capacity_bytes()
    vmem_limit = max(16 << 20, min(int(est * 1.3) + (2 << 20), cap - (8 << 20)))

    grid_spec = pltpu.PrefetchScalarGridSpec(
        num_scalar_prefetch=1,
        grid=(n_i, E, n_f),
        in_specs=[
            pl.BlockSpec((tm, H), lambda i, e, f, fl: (i, 0)),        # x tile
            pl.BlockSpec((1, H, tf), lambda i, e, f, fl: (e, 0, f)),  # w1[e] F-tile
            pl.BlockSpec((1, H, tf), lambda i, e, f, fl: (e, 0, f)),  # w3[e] F-tile
            pl.BlockSpec((1, tf, H), lambda i, e, f, fl: (e, f, 0)),  # w2[e] F-tile
            pl.BlockSpec((1, tm, 1), lambda i, e, f, fl: (e, i, 0)),  # routing col
        ],
        out_specs=pl.BlockSpec((tm, H), lambda i, e, f, fl: (i, 0)),
        scratch_shapes=[pltpu.VMEM((tm, H), jnp.float32)],
    )

    out = pl.pallas_call(
        _moe_kernel,
        out_shape=jax.ShapeDtypeStruct((T_pad, H), x2d.dtype),
        grid_spec=grid_spec,
        compiler_params=pltpu.CompilerParams(
            dimension_semantics=("parallel", "arbitrary", "arbitrary"),
            vmem_limit_bytes=int(vmem_limit),
        ),
    )(flags, x2d, w1, w3, w2, rw)

    return out[:T] if T_pad != T else out


def _routing_dense_weights(x2d, gate_w, top_k):
    """softmax -> top-k -> renormalize, as a dense [T, E] weight matrix (f32)."""
    E = gate_w.shape[0]
    logits = jnp.dot(x2d, gate_w.T)
    probs = jax.nn.softmax(logits.astype(jnp.float32), axis=-1)
    top_vals, top_idx = jax.lax.top_k(probs, top_k)
    top_vals = top_vals / jnp.sum(top_vals, axis=-1, keepdims=True)
    dense = jnp.sum(
        jnp.where(top_idx[..., None] == jnp.arange(E)[None, None, :],
                  top_vals[..., None], 0.0),
        axis=1)
    return dense.astype(jnp.float32)


@functools.partial(jax.jit, static_argnames=("top_k", "tm", "tf"))
def mixtral_moe_forward(hidden_states, gate_w, w1, w3, w2, *, top_k, tm=256, tf=None):
    """hidden_states: [B, S, H]; gate_w: [E, H]. Production: bf16 inputs, tm>=256."""
    B, S, H = hidden_states.shape
    x = hidden_states.reshape(-1, H)
    dense_w = _routing_dense_weights(x, gate_w, top_k)            # [T, E] f32 glue
    out = mixtral_moe_pallas(x, w1, w3, w2, dense_w, tm=tm, tf=tf)
    # tp_size == 1 -> tensor_model_parallel_all_reduce is the identity.
    return out.reshape(B, S, H)


# ----------------------------- references (pure JAX) -------------------------

def _moe_dense_loop_reference(x2d, w1, w3, w2, dense_w):
    xf = x2d.astype(jnp.float32)
    E = w1.shape[0]
    final = jnp.zeros((x2d.shape[0], w2.shape[-1]), jnp.float32)
    for e in range(E):
        w_e = dense_w[:, e:e + 1]
        h1 = xf @ w1[e].astype(jnp.float32)
        h1 = h1 * jax.nn.sigmoid(h1)
        h3 = xf @ w3[e].astype(jnp.float32)
        final = final + ((h1 * h3) @ w2[e].astype(jnp.float32)) * w_e
    return final


def _reference_forward(hidden_states, gate_w, w1, w3, w2, top_k):
    B, S, H = hidden_states.shape
    x = hidden_states.reshape(-1, H)
    dense_w = _routing_dense_weights(x, gate_w, top_k)
    return _moe_dense_loop_reference(x, w1, w3, w2, dense_w).reshape(B, S, H)


if __name__ == "__main__":
    # Small config consistent with MixtralConfig fields used by the module.
    # Chosen so the kernel exercises >1 token tile (parallel axis) and >1 FFN
    # tile (F-tiled reduction).
    batch, seq = 2, 16
    hidden_size = 128
    intermediate_size = 256
    num_local_experts = 8
    num_experts_per_tok = 2
    tm, tf = 16, 128          # demo tiles; production: tm>=256, tf auto (per-chip)

    key = jax.random.PRNGKey(0)
    k_x, k_g, k_w1, k_w3, k_w2 = jax.random.split(key, 5)

    hidden_states = jax.random.normal(k_x, (batch, seq, hidden_size), jnp.float32)
    gate_w = 0.1 * jax.random.normal(
        k_g, (num_local_experts, hidden_size), jnp.float32)
    w1 = 0.1 * jax.random.normal(
        k_w1, (num_local_experts, hidden_size, intermediate_size), jnp.float32)
    w3 = 0.1 * jax.random.normal(
        k_w3, (num_local_experts, hidden_size, intermediate_size), jnp.float32)
    w2 = 0.1 * jax.random.normal(
        k_w2, (num_local_experts, intermediate_size, hidden_size), jnp.float32)

    # --- float32 end-to-end forward vs. pure-JAX reference ---
    out = mixtral_moe_forward(hidden_states, gate_w, w1, w3, w2,
                              top_k=num_experts_per_tok, tm=tm, tf=tf)
    out = jax.block_until_ready(out)
    ref = _reference_forward(hidden_states, gate_w, w1, w3, w2,
                             num_experts_per_tok)
    np.testing.assert_allclose(np.asarray(out), np.asarray(ref),
                               rtol=2e-3, atol=2e-3)

    # --- bf16 run (production dtype); same routing weights fed to both paths ---
    x_bf = hidden_states.astype(jnp.bfloat16).reshape(-1, hidden_size)
    w1_bf, w3_bf, w2_bf = (w.astype(jnp.bfloat16) for w in (w1, w3, w2))
    dense_bf = _routing_dense_weights(x_bf, gate_w.astype(jnp.bfloat16),
                                      num_experts_per_tok)
    out_bf = mixtral_moe_pallas(x_bf, w1_bf, w3_bf, w2_bf, dense_bf, tm=tm, tf=tf)
    out_bf = jax.block_until_ready(out_bf)
    ref_bf = _moe_dense_loop_reference(x_bf, w1_bf, w3_bf, w2_bf, dense_bf)
    np.testing.assert_allclose(np.asarray(out_bf.astype(jnp.float32)),
                               np.asarray(ref_bf), rtol=5e-2, atol=5e-2)

    print("KERNEL_OK")
</pallas_src>

<mosaic_0001>
module attributes {stable_mosaic.version = 11 : i64} {
  func.func @_moe_kernel(%arg0: i32, %arg1: i32, %arg2: i32, %arg3: memref<16xi32, #tpu.memory_space<smem>>, %arg4: memref<16x128xf32, #tpu.memory_space<vmem>>, %arg5: memref<1x128x128xf32, #tpu.memory_space<vmem>>, %arg6: memref<1x128x128xf32, #tpu.memory_space<vmem>>, %arg7: memref<1x128x128xf32, #tpu.memory_space<vmem>>, %arg8: memref<1x16x1xf32, #tpu.memory_space<vmem>>, %arg9: memref<16x128xf32, #tpu.memory_space<vmem>>, %arg10: memref<16x128xf32, #tpu.memory_space<vmem>>) attributes {dimension_semantics = [#tpu.dimension_semantics<parallel>, #tpu.dimension_semantics<arbitrary>, #tpu.dimension_semantics<arbitrary>], iteration_bounds = array<i64: 2, 8, 2>, scalar_prefetch = 1 : i64, scratch_operands = 1 : i64, tpu.core_type = #tpu.core_type<tc>, window_params = [{transform_indices = @transform_0, window_bounds = array<i64: 16, 128>}, {transform_indices = @transform_1, window_bounds = array<i64: 1, 128, 128>}, {transform_indices = @transform_2, window_bounds = array<i64: 1, 128, 128>}, {transform_indices = @transform_3, window_bounds = array<i64: 1, 128, 128>}, {transform_indices = @transform_4, window_bounds = array<i64: 1, 16, 1>}, {transform_indices = @transform_5, window_bounds = array<i64: 16, 128>}]} {
    %c0_i32 = arith.constant 0 : i32
    %0 = arith.cmpi eq, %arg1, %c0_i32 : i32
    %c0_i32_0 = arith.constant 0 : i32
    %1 = arith.cmpi eq, %arg2, %c0_i32_0 : i32
    %2 = arith.andi %0, %1 : i1
    %3 = arith.extui %2 : i1 to i32
    %c0_i32_1 = arith.constant 0 : i32
    %4 = arith.cmpi ne, %3, %c0_i32_1 : i32
    scf.if %4 {
      %cst = arith.constant 0.000000e+00 : f32
      %17 = vector.broadcast %cst : f32 to vector<16x128xf32>
      %c0 = arith.constant 0 : index
      %c0_5 = arith.constant 0 : index
      %18 = vector.load %arg10[%c0, %c0_5] : memref<16x128xf32, #tpu.memory_space<vmem>>, vector<16x128xf32>
      tpu.vector_store %arg10[%c0, %c0_5], %17 {strides = array<i32>} : memref<16x128xf32, #tpu.memory_space<vmem>>, vector<16x128xf32>,
    } else {
    }
    %c8_i32 = arith.constant 8 : i32
    %5 = arith.muli %arg0, %c8_i32 : i32
    %6 = arith.addi %5, %arg1 : i32
    %7 = arith.index_cast %6 : i32 to index
    %8 = memref.load %arg3[%7] : memref<16xi32, #tpu.memory_space<smem>>
    %c0_i32_2 = arith.constant 0 : i32
    %9 = arith.cmpi ne, %8, %c0_i32_2 : i32
    %10 = arith.extui %9 : i1 to i32
    %c0_i32_3 = arith.constant 0 : i32
    %11 = arith.cmpi ne, %10, %c0_i32_3 : i32
    scf.if %11 {
      %c0 = arith.constant 0 : index
      %c0_5 = arith.constant 0 : index
      %17 = vector.load %arg4[%c0, %c0_5] : memref<16x128xf32, #tpu.memory_space<vmem>>, vector<16x128xf32>
      %c0_6 = arith.constant 0 : index
      %c0_7 = arith.constant 0 : index
      %c0_8 = arith.constant 0 : index
      %18 = vector.load %arg8[%c0_6, %c0_7, %c0_8] : memref<1x16x1xf32, #tpu.memory_space<vmem>>, vector<1x16x1xf32>
      %19 = vector.shape_cast %18 : vector<1x16x1xf32> to vector<16x1xf32>
      %c0_9 = arith.constant 0 : index
      %c0_10 = arith.constant 0 : index
      %c0_11 = arith.constant 0 : index
      %20 = vector.load %arg5[%c0_9, %c0_10, %c0_11] : memref<1x128x128xf32, #tpu.memory_space<vmem>>, vector<1x128x128xf32>
      %21 = vector.shape_cast %20 : vector<1x128x128xf32> to vector<128x128xf32>
      %cst = arith.constant dense<0.000000e+00> : vector<16x128xf32>
      %22 = tpu.matmul %17, %21, %cst {dimension_numbers = #tpu.dot_dimension_numbers<[1], [0], [0], [1], [0, 0, 1, 1], [], []>} : vector<16x128xf32>, vector<128x128xf32>, vector<16x128xf32> -> vector<16x128xf32>
      %c0_12 = arith.constant 0 : index
      %c0_13 = arith.constant 0 : index
      %c0_14 = arith.constant 0 : index
      %23 = vector.load %arg6[%c0_12, %c0_13, %c0_14] : memref<1x128x128xf32, #tpu.memory_space<vmem>>, vector<1x128x128xf32>
      %24 = vector.shape_cast %23 : vector<1x128x128xf32> to vector<128x128xf32>
      %cst_15 = arith.constant dense<0.000000e+00> : vector<16x128xf32>
      %25 = tpu.matmul %17, %24, %cst_15 {dimension_numbers = #tpu.dot_dimension_numbers<[1], [0], [0], [1], [0, 0, 1, 1], [], []>} : vector<16x128xf32>, vector<128x128xf32>, vector<16x128xf32> -> vector<16x128xf32>
      %26 = arith.negf %22 : vector<16x128xf32>
      %27 = math.exp %26 : vector<16x128xf32>
      %cst_16 = arith.constant 1.000000e+00 : f32
      %28 = vector.broadcast %cst_16 : f32 to vector<16x128xf32>
      %29 = arith.addf %28, %27 : vector<16x128xf32>
      %30 = arith.divf %28, %29 : vector<16x128xf32>
      %31 = arith.mulf %22, %30 : vector<16x128xf32>
      %32 = arith.mulf %31, %25 : vector<16x128xf32>
      %33 = vector.broadcast %19 : vector<16x1xf32> to vector<16x128xf32>
      %34 = arith.mulf %32, %33 : vector<16x128xf32>
      %c0_17 = arith.constant 0 : index
      %c0_18 = arith.constant 0 : index
      %35 = vector.load %arg10[%c0_17, %c0_18] : memref<16x128xf32, #tpu.memory_space<vmem>>, vector<16x128xf32>
      %c0_19 = arith.constant 0 : index
      %c0_20 = arith.constant 0 : index
      %c0_21 = arith.constant 0 : index
      %36 = vector.load %arg7[%c0_19, %c0_20, %c0_21] : memref<1x128x128xf32, #tpu.memory_space<vmem>>, vector<1x128x128xf32>
      %37 = vector.shape_cast %36 : vector<1x128x128xf32> to vector<128x128xf32>
      %cst_22 = arith.constant dense<0.000000e+00> : vector<16x128xf32>
      %38 = tpu.matmul %34, %37, %cst_22 {dimension_numbers = #tpu.dot_dimension_numbers<[1], [0], [0], [1], [0, 0, 1, 1], [], []>} : vector<16x128xf32>, vector<128x128xf32>, vector<16x128xf32> -> vector<16x128xf32>
      %39 = arith.addf %35, %38 : vector<16x128xf32>
      %c0_23 = arith.constant 0 : index
      %c0_24 = arith.constant 0 : index
      %40 = vector.load %arg10[%c0_23, %c0_24] : memref<16x128xf32, #tpu.memory_space<vmem>>, vector<16x128xf32>
      tpu.vector_store %arg10[%c0_23, %c0_24], %39 {strides = array<i32>} : memref<16x128xf32, #tpu.memory_space<vmem>>, vector<16x128xf32>,
    } else {
    }
    %c7_i32 = arith.constant 7 : i32
    %12 = arith.cmpi eq, %arg1, %c7_i32 : i32
    %c1_i32 = arith.constant 1 : i32
    %13 = arith.cmpi eq, %arg2, %c1_i32 : i32
    %14 = arith.andi %12, %13 : i1
    %15 = arith.extui %14 : i1 to i32
    %c0_i32_4 = arith.constant 0 : i32
    %16 = arith.cmpi ne, %15, %c0_i32_4 : i32
    scf.if %16 {
      %c0 = arith.constant 0 : index
      %c0_5 = arith.constant 0 : index
      %17 = vector.load %arg10[%c0, %c0_5] : memref<16x128xf32, #tpu.memory_space<vmem>>, vector<16x128xf32>
      %c0_6 = arith.constant 0 : index
      %c0_7 = arith.constant 0 : index
      %18 = vector.load %arg9[%c0_6, %c0_7] : memref<16x128xf32, #tpu.memory_space<vmem>>, vector<16x128xf32>
      tpu.vector_store %arg9[%c0_6, %c0_7], %17 {strides = array<i32>} : memref<16x128xf32, #tpu.memory_space<vmem>>, vector<16x128xf32>,
    } else {
    }
    return
  }
  func.func @transform_0(%arg0: i32, %arg1: i32, %arg2: i32, %arg3: memref<16xi32, #tpu.memory_space<smem>>) -> (i32, i32) {
    %c0_i32 = arith.constant 0 : i32
    %c0_i32_0 = arith.constant 0 : i32
    return %arg0, %c0_i32 : i32, i32
  }
  func.func @transform_1(%arg0: i32, %arg1: i32, %arg2: i32, %arg3: memref<16xi32, #tpu.memory_space<smem>>) -> (i32, i32, i32) {
    %c0_i32 = arith.constant 0 : i32
    %c0_i32_0 = arith.constant 0 : i32
    return %arg1, %c0_i32, %arg2 : i32, i32, i32
  }
  func.func @transform_2(%arg0: i32, %arg1: i32, %arg2: i32, %arg3: memref<16xi32, #tpu.memory_space<smem>>) -> (i32, i32, i32) {
    %c0_i32 = arith.constant 0 : i32
    %c0_i32_0 = arith.constant 0 : i32
    return %arg1, %c0_i32, %arg2 : i32, i32, i32
  }
  func.func @transform_3(%arg0: i32, %arg1: i32, %arg2: i32, %arg3: memref<16xi32, #tpu.memory_space<smem>>) -> (i32, i32, i32) {
    %c0_i32 = arith.constant 0 : i32
    %c0_i32_0 = arith.constant 0 : i32
    return %arg1, %arg2, %c0_i32 : i32, i32, i32
  }
  func.func @transform_4(%arg0: i32, %arg1: i32, %arg2: i32, %arg3: memref<16xi32, #tpu.memory_space<smem>>) -> (i32, i32, i32) {
    %c0_i32 = arith.constant 0 : i32
    %c0_i32_0 = arith.constant 0 : i32
    return %arg1, %arg0, %c0_i32 : i32, i32, i32
  }
  func.func @transform_5(%arg0: i32, %arg1: i32, %arg2: i32, %arg3: memref<16xi32, #tpu.memory_space<smem>>) -> (i32, i32) {
    %c0_i32 = arith.constant 0 : i32
    %c0_i32_0 = arith.constant 0 : i32
    return %arg0, %c0_i32 : i32, i32
  }
}

</mosaic_0001>

<llo_original>
// kernel: mixtral_moe_forward.1
$region0: #{mixtral_moe_forward.1}
  #allocation0 [shape = 'u32[]', space=smem, size = 0x4, offset = 0x4, fixed_abs, tag = 'smem constant byte address 0x4 - core index']
  #allocation1 [shape = 'u32[72,128]{1,0:T(1,128)}', space=vmem, size = 0x9000, scoped, tag = 'internal scratch']
  #allocation2 [shape = 'f32[16,128]{1,0:T(8,128)}', space=vmem, size = 0x2000, scoped, tag = 'scratch operand']
  #allocation3 [shape = 's32[1]{0}', space=sflag, size = 0x4, scoped, tag = 'scoped memory for mixtral_moe_forward.1']
  #allocation4 [shape = 'u8[512]{0}', space=smem, size = 0x200, scoped, tag = 'prefetched SMEM operand 0']
  %s0 = inlined_call_operand.vmem [shape: s32[16], index: 0, kind: input, shape index: {}]
  %s1 = inlined_call_operand.vmem [shape: f32[32,128], index: 1, kind: input, shape index: {}]
  %s2 = inlined_call_operand.hbm [shape: f32[8,128,256], index: 2, kind: input, shape index: {}]
  %s3 = inlined_call_operand.hbm [shape: f32[8,128,256], index: 3, kind: input, shape index: {}]
  %s4 = inlined_call_operand.hbm [shape: f32[8,256,128], index: 4, kind: input, shape index: {}]
  %s5 = inlined_call_operand.vmem [shape: f32[8,32,1], index: 5, kind: input, shape index: {}]
  %s6 = inlined_call_operand.hbm [shape: f32[32,128], index: 6, kind: output, shape index: {}]
  %s7 = sld [smem:[#allocation0]]
  $region77: #{mixtral_moe_forward.1} parent=0
    _
  %s9 = ssub.s32 1, %s7
  %s10 = scalar_select 0, %s9, %s7
  %s12 = sshll.u32 %s0, 4
  %s13 = int_to_ptr.vmem [resolvable:$true] %s12
  %15 = dma.vmem_to_smem %s13, 16, [#allocation4], [#allocation3]
  %17 = dma.done [#allocation3], 16
  %18 = sfence
  $region1: #{mixtral_moe_forward.1} parent=0
    #allocation5 [shape = 'u8[131072]{0}', space=vmem, size = 0x20000, scoped, tag = 'input window, operand 2']
    #allocation6 [shape = 's32[2]{0}', space=sflag, size = 0x8, scoped, tag = 'scoped memory for mixtral_moe_forward.1']
    #allocation7 [shape = 's32[2]{0}', space=sflag, size = 0x8, scoped, tag = 'scoped memory for mixtral_moe_forward.1']
    #allocation8 [shape = 'u8[131072]{0}', space=vmem, size = 0x20000, scoped, tag = 'input window, operand 3']
    #allocation9 [shape = 's32[2]{0}', space=sflag, size = 0x8, scoped, tag = 'scoped memory for mixtral_moe_forward.1']
    #allocation10 [shape = 'u8[131072]{0}', space=vmem, size = 0x20000, scoped, tag = 'input window, operand 4']
    #allocation11 [shape = 'u8[16384]{0}', space=vmem, size = 0x4000, scoped, tag = 'output window, operand 0']
    %19 = vsyncpa [#allocation6], 0
    %s20 = scalar_lea.sflag [#allocation6], 1
    %21 = vsyncpa %s20, 0
    %22 = vsyncpa [#allocation9], 0
    %s23 = scalar_lea.sflag [#allocation9], 1
    %24 = vsyncpa %s23, 0
    %25 = vsyncpa [#allocation7], 0
    %s26 = scalar_lea.sflag [#allocation7], 1
    %27 = vsyncpa %s26, 0
    loop: start=0, step=1, limit=34
    $region2: #{mixtral_moe_forward.1} parent=1 // loop_pre_header
      _
    $region3: #{mixtral_moe_forward.1} parent=1 // loop_header
      %s29 = sphi 0, %s33
      %p30 = scmp.ge.s32.totalorder %s29, 34
      %s36 = sphi 0, %s55
      %s37 = sphi 0, %s51
      %s38 = sphi 0, %s47
      %s39 = sphi 0, %s36
      %s40 = sphi 0, %s37
      %s41 = sphi 0, %s38
      %s42 = sphi 0, %s39
      %s43 = sphi 0, %s40
      %s44 = sphi 0, %s41
      %s58 = sphi 0, %s60
      %s61 = sphi 0, %s58
      %s62 = sphi 0, %s61
      %s78 = sphi 0, %s62
      %s86 = sphi 0, %s88
      %s89 = sphi 0, %s86
      %s90 = sphi 0, %s89
      %s106 = sphi 0, %s90
      %s114 = sphi 0, %s116
      %s117 = sphi 0, %s114
      %s118 = sphi 0, %s117
      %s134 = sphi 0, %s118
      %s142 = sphi 0, %s144
      %s145 = sphi 0, %s142
      %s146 = sphi 0, %s145
      %s162 = sphi 0, %s146
      %s170 = sphi 0, %s172
      %s173 = sphi 0, %s170
      %s174 = sphi 0, %s173
      %s190 = sphi 0, %s174
      %s196 = sphi 0, %s198
      %s199 = sphi 0, %s196
      %s200 = sphi 0, %s199
      %s216 = sphi 0, %s200
    $region4: #{mixtral_moe_forward.1} parent=1 // loop_header_branch
      %32 = sbr.rel (%p30) target = $region8
    $region5: #{mixtral_moe_forward.1} parent=1 // loop_body
      %s34 = ssub.s32 %s29, 1
      %s35 = ssub.s32 %s29, 2
      %s45 = sadd.s32 1, %s38
      %p46 = scmp.ge.s32.totalorder %s45, 2
      %s47 = scalar_select %p46, 0, %s45
      %s48 = sadd.s32 1, %s37
      %s49 = scalar_select %p46, %s48, %s37
      %p50 = scmp.ge.s32.totalorder %s49, 8
      %s51 = scalar_select %p50, 0, %s49
      %s52 = sadd.s32 1, %s36
      %s53 = scalar_select %p50, %s52, %s36
      %p54 = scmp.ge.s32.totalorder %s53, 2
      %s55 = scalar_select %p54, 0, %s53
      %s56 = ssub.s32 %s36, %s55
      %p57 = scmp.eq.s32.totalorder %s56, 0
      %s59 = sadd.s32 %s58, 1
      %s60 = scalar_select %p57, %s58, %s59
      %p63 = pneg %p57
      %p64 = scmp.eq.s32.totalorder %s29, 31
      %p65 = por %p63, %p64
      %p66 = scmp.ne.s32.totalorder %s58, %s61
      %p67 = scmp.eq.s32.totalorder %s29, 0
      %p68 = por %p66, %p67
      %p69 = scmp.ne.s32.totalorder %s58, %s61
      %p70 = scmp.eq.s32.totalorder %s34, 31
      %p71 = por %p69, %p70
      %p72 = scmp.ne.s32.totalorder %s61, %s62
      %p73 = scmp.eq.s32.totalorder %s34, 0
      %p74 = por %p72, %p73
      %p75 = scmp.ne.s32.totalorder %s61, %s62
      %p76 = scmp.eq.s32.totalorder %s35, 31
      %p77 = por %p75, %p76
      %p79 = scmp.ne.s32.totalorder %s62, %s78
      %p80 = scmp.eq.s32.totalorder %s35, 0
      %p81 = por %p79, %p80
      %s82 = ssub.s32 %s37, %s51
      %s83 = ssub.s32 %s38, %s47
      %s84 = sor.u32 %s82, %s83
      %p85 = scmp.eq.s32.totalorder %s84, 0
      %s87 = sadd.s32 %s86, 1
      %s88 = scalar_select %p85, %s86, %s87
      %p91 = pneg %p85
      %p92 = scmp.eq.s32.totalorder %s29, 31
      %p93 = por %p91, %p92
      %p94 = scmp.ne.s32.totalorder %s86, %s89
      %p95 = scmp.eq.s32.totalorder %s29, 0
      %p96 = por %p94, %p95
      %p97 = scmp.ne.s32.totalorder %s86, %s89
      %p98 = scmp.eq.s32.totalorder %s34, 31
      %p99 = por %p97, %p98
      %p100 = scmp.ne.s32.totalorder %s89, %s90
      %p101 = scmp.eq.s32.totalorder %s34, 0
      %p102 = por %p100, %p101
      %p103 = scmp.ne.s32.totalorder %s89, %s90
      %p104 = scmp.eq.s32.totalorder %s35, 31
      %p105 = por %p103, %p104
      %p107 = scmp.ne.s32.totalorder %s90, %s106
      %p108 = scmp.eq.s32.totalorder %s35, 0
      %p109 = por %p107, %p108
      %s110 = ssub.s32 %s37, %s51
      %s111 = ssub.s32 %s38, %s47
      %s112 = sor.u32 %s110, %s111
      %p113 = scmp.eq.s32.totalorder %s112, 0
      %s115 = sadd.s32 %s114, 1
      %s116 = scalar_select %p113, %s114, %s115
      %p119 = pneg %p113
      %p120 = scmp.eq.s32.totalorder %s29, 31
      %p121 = por %p119, %p120
      %p122 = scmp.ne.s32.totalorder %s114, %s117
      %p123 = scmp.eq.s32.totalorder %s29, 0
      %p124 = por %p122, %p123
      %p125 = scmp.ne.s32.totalorder %s114, %s117
      %p126 = scmp.eq.s32.totalorder %s34, 31
      %p127 = por %p125, %p126
      %p128 = scmp.ne.s32.totalorder %s117, %s118
      %p129 = scmp.eq.s32.totalorder %s34, 0
      %p130 = por %p128, %p129
      %p131 = scmp.ne.s32.totalorder %s117, %s118
      %p132 = scmp.eq.s32.totalorder %s35, 31
      %p133 = por %p131, %p132
      %p135 = scmp.ne.s32.totalorder %s118, %s134
      %p136 = scmp.eq.s32.totalorder %s35, 0
      %p137 = por %p135, %p136
      %s138 = ssub.s32 %s37, %s51
      %s139 = ssub.s32 %s38, %s47
      %s140 = sor.u32 %s138, %s139
      %p141 = scmp.eq.s32.totalorder %s140, 0
      %s143 = sadd.s32 %s142, 1
      %s144 = scalar_select %p141, %s142, %s143
      %p147 = pneg %p141
      %p148 = scmp.eq.s32.totalorder %s29, 31
      %p149 = por %p147, %p148
      %p150 = scmp.ne.s32.totalorder %s142, %s145
      %p151 = scmp.eq.s32.totalorder %s29, 0
      %p152 = por %p150, %p151
      %p153 = scmp.ne.s32.totalorder %s142, %s145
      %p154 = scmp.eq.s32.totalorder %s34, 31
      %p155 = por %p153, %p154
      %p156 = scmp.ne.s32.totalorder %s145, %s146
      %p157 = scmp.eq.s32.totalorder %s34, 0
      %p158 = por %p156, %p157
      %p159 = scmp.ne.s32.totalorder %s145, %s146
      %p160 = scmp.eq.s32.totalorder %s35, 31
      %p161 = por %p159, %p160
      %p163 = scmp.ne.s32.totalorder %s146, %s162
      %p164 = scmp.eq.s32.totalorder %s35, 0
      %p165 = por %p163, %p164
      %s166 = ssub.s32 %s37, %s51
      %s167 = ssub.s32 %s36, %s55
      %s168 = sor.u32 %s166, %s167
      %p169 = scmp.eq.s32.totalorder %s168, 0
      %s171 = sadd.s32 %s170, 1
      %s172 = scalar_select %p169, %s170, %s171
      %p175 = pneg %p169
      %p176 = scmp.eq.s32.totalorder %s29, 31
      %p177 = por %p175, %p176
      %p178 = scmp.ne.s32.totalorder %s170, %s173
      %p179 = scmp.eq.s32.totalorder %s29, 0
      %p180 = por %p178, %p179
      %p181 = scmp.ne.s32.totalorder %s170, %s173
      %p182 = scmp.eq.s32.totalorder %s34, 31
      %p183 = por %p181, %p182
      %p184 = scmp.ne.s32.totalorder %s173, %s174
      %p185 = scmp.eq.s32.totalorder %s34, 0
      %p186 = por %p184, %p185
      %p187 = scmp.ne.s32.totalorder %s173, %s174
      %p188 = scmp.eq.s32.totalorder %s35, 31
      %p189 = por %p187, %p188
      %p191 = scmp.ne.s32.totalorder %s174, %s190
      %p192 = scmp.eq.s32.totalorder %s35, 0
      %p193 = por %p191, %p192
      %s194 = ssub.s32 %s36, %s55
      %p195 = scmp.eq.s32.totalorder %s194, 0
      %s197 = sadd.s32 %s196, 1
      %s198 = scalar_select %p195, %s196, %s197
      %p201 = pneg %p195
      %p202 = scmp.eq.s32.totalorder %s29, 31
      %p203 = por %p201, %p202
      %p204 = scmp.ne.s32.totalorder %s196, %s199
      %p205 = scmp.eq.s32.totalorder %s29, 0
      %p206 = por %p204, %p205
      %p207 = scmp.ne.s32.totalorder %s196, %s199
      %p208 = scmp.eq.s32.totalorder %s34, 31
      %p209 = por %p207, %p208
      %p210 = scmp.ne.s32.totalorder %s199, %s200
      %p211 = scmp.eq.s32.totalorder %s34, 0
      %p212 = por %p210, %p211
      %p213 = scmp.ne.s32.totalorder %s199, %s200
      %p214 = scmp.eq.s32.totalorder %s35, 31
      %p215 = por %p213, %p214
      %p217 = scmp.ne.s32.totalorder %s200, %s216
      %p218 = scmp.eq.s32.totalorder %s35, 0
      %p219 = por %p217, %p218
      %p220 = scmp.le.s32.totalorder 1, %s29
      %p221 = scmp.lt.s32.totalorder %s29, 33
      %p222 = pnand %p220, %p221
      %p223 = pneg %p222
      // Predicated region
      $region9: #{mixtral_moe_forward.1} parent=5 // pred_check
        _
      $region10: #{mixtral_moe_forward.1} parent=5 // pred_check_branch
        %225 = sbr.rel (%p222) target = $region12
      $region11: #{mixtral_moe_forward.1} parent=5 // pred_region
        %s226 = ssub.s32 %s29, 1
      $region12: #{mixtral_moe_forward.1} parent=5 // pred_fallthru
        _
      %p227 = scmp.lt.s32.totalorder %s29, 32
      // Predicated region
      $region13: #{mixtral_moe_forward.1} parent=5 // pred_check
        %p228 = pneg %p227
      $region14: #{mixtral_moe_forward.1} parent=5 // pred_check_branch
        %230 = sbr.rel (%p228) target = $region16
      $region15: #{mixtral_moe_forward.1} parent=5 // pred_region
        // Predicated region
        $region17: #{mixtral_moe_forward.1} parent=15 // pred_check
          %p231 = pneg %p68
        $region18: #{mixtral_moe_forward.1} parent=15 // pred_check_branch
          %233 = sbr.rel (%p231) target = $region20
        $region19: #{mixtral_moe_forward.1} parent=15 // pred_region
          %s234 = smul.u32 2, %s36
          %p235 = scmp.lt.s32.totalorder %s234, 3
          %s236 = scalar_select %p235, %s234, 3
          %s237 = smul.addr %s236, 8
          %s238 = scalar_lea.vmem %s1, %s237
          %s239 = smul.u32 2, %s36
        $region20: #{mixtral_moe_forward.1} parent=15 // pred_fallthru
          _
        // Predicated region
        $region21: #{mixtral_moe_forward.1} parent=15 // pred_check
          %p240 = pneg %p96
        $region22: #{mixtral_moe_forward.1} parent=15 // pred_check_branch
          %242 = sbr.rel (%p240) target = $region24
        $region23: #{mixtral_moe_forward.1} parent=15 // pred_region
          %s243 = sand.u32 %s86, 1
          %s244 = scalar_lea.sflag [#allocation6], %s243
          %s245 = sand.u32 %s86, 1
          %s246 = smul.addr %s245, 128
          %s247 = scalar_lea.vmem [#allocation5], %s246
          %249 = vsyncadd %s244, 0
          %s250 = smul.addr %s37, 32
          %s251 = sadd.s32 %s38, %s250
          %s252 = smul.addr %s251, 8
          %s253 = scalar_lea.hbm %s2, %s252
          %s254 = sshll.u32 %s253, 4
          %s255 = int_to_ptr.hbm [resolvable:$true] %s254
          %s256 = sshll.u32 %s247, 4
          %s257 = int_to_ptr.vmem [resolvable:$true] %s256
          %262 = dma.hbm_to_vmem [thread:$0]  %s255, 2048, %s257, %s244, 256, 128, 8
        $region24: #{mixtral_moe_forward.1} parent=15 // pred_fallthru
          _
        // Predicated region
        $region25: #{mixtral_moe_forward.1} parent=15 // pred_check
          %p263 = pneg %p124
        $region26: #{mixtral_moe_forward.1} parent=15 // pred_check_branch
          %265 = sbr.rel (%p263) target = $region28
        $region27: #{mixtral_moe_forward.1} parent=15 // pred_region
          %s266 = sand.u32 %s29, 1
          %s267 = scalar_lea.sflag [#allocation9], %s266
          %s268 = sand.u32 %s114, 1
          %s269 = smul.addr %s268, 128
          %s270 = scalar_lea.vmem [#allocation8], %s269
          %272 = vsyncadd %s267, 0
          %s273 = smul.addr %s37, 32
          %s274 = sadd.s32 %s38, %s273
          %s275 = smul.addr %s274, 8
          %s276 = scalar_lea.hbm %s3, %s275
          %s277 = sshll.u32 %s276, 4
          %s278 = int_to_ptr.hbm [resolvable:$true] %s277
          %s279 = sshll.u32 %s270, 4
          %s280 = int_to_ptr.vmem [resolvable:$true] %s279
          %285 = dma.hbm_to_vmem [thread:$0]  %s278, 2048, %s280, %s267, 256, 128, 8
        $region28: #{mixtral_moe_forward.1} parent=15 // pred_fallthru
          _
        // Predicated region
        $region29: #{mixtral_moe_forward.1} parent=15 // pred_check
          %p286 = pneg %p152
        $region30: #{mixtral_moe_forward.1} parent=15 // pred_check_branch
          %288 = sbr.rel (%p286) target = $region32
        $region31: #{mixtral_moe_forward.1} parent=15 // pred_region
          %s289 = sand.u32 %s29, 1
          %s290 = scalar_lea.sflag [#allocation9], %s289
          %s291 = sand.u32 %s142, 1
          %s292 = smul.addr %s291, 128
          %s293 = scalar_lea.vmem [#allocation10], %s292
          %s294 = smul.u32 16, %s38
          %296 = vsyncadd %s290, 0
          %s297 = smul.addr %s37, 32
          %s298 = sadd.s32 %s294, %s297
          %s299 = smul.addr %s298, 8
          %s300 = scalar_lea.hbm %s4, %s299
          %s301 = sshll.u32 %s300, 4
          %s302 = int_to_ptr.hbm [resolvable:$true] %s301
          %s303 = sshll.u32 %s293, 4
          %s304 = int_to_ptr.vmem [resolvable:$true] %s303
          %309 = dma.hbm_to_vmem [thread:$0]  %s302, 2048, %s304, %s290, 128, 128, 8
        $region32: #{mixtral_moe_forward.1} parent=15 // pred_fallthru
          _
        // Predicated region
        $region33: #{mixtral_moe_forward.1} parent=15 // pred_check
          %p310 = pneg %p180
        $region34: #{mixtral_moe_forward.1} parent=15 // pred_check_branch
          %312 = sbr.rel (%p310) target = $region36
        $region35: #{mixtral_moe_forward.1} parent=15 // pred_region
          %s313 = smul.u32 2, %s36
          %p314 = scmp.lt.s32.totalorder %s37, 7
          %s315 = scalar_select %p314, %s37, 7
          %p316 = scmp.lt.s32.totalorder %s313, 3
          %s317 = scalar_select %p316, %s313, 3
          %s318 = smul.addr %s315, 4
          %s319 = sadd.s32 %s317, %s318
          %s320 = smul.addr %s319, 8
          %s321 = scalar_lea.vmem %s5, %s320
          %s322 = smul.u32 2, %s36
        $region36: #{mixtral_moe_forward.1} parent=15 // pred_fallthru
          _
      $region16: #{mixtral_moe_forward.1} parent=5 // pred_fallthru
        _
      %p323 = scmp.le.s32.totalorder 1, %s29
      %p324 = scmp.lt.s32.totalorder %s29, 33
      %p325 = pnand %p323, %p324
      %p326 = pneg %p325
      // Predicated region
      $region37: #{mixtral_moe_forward.1} parent=5 // pred_check
        _
      $region38: #{mixtral_moe_forward.1} parent=5 // pred_check_branch
        %328 = sbr.rel (%p325) target = $region40
      $region39: #{mixtral_moe_forward.1} parent=5 // pred_region
        %s329 = ssub.s32 %s29, 1
        %s330 = sand.u32 %s89, 1
        %s331 = scalar_lea.sflag [#allocation6], %s330
        %s332 = sand.u32 %s89, 1
        %s333 = smul.addr %s332, 128
        %s334 = scalar_lea.vmem [#allocation5], %s333
        // Predicated region
        $region41: #{mixtral_moe_forward.1} parent=39 // pred_check
          %p335 = pneg %p102
        $region42: #{mixtral_moe_forward.1} parent=39 // pred_check_branch
          %337 = sbr.rel (%p335) target = $region44
        $region43: #{mixtral_moe_forward.1} parent=39 // pred_region
          %339 = dma.done %s331, 2048
        $region44: #{mixtral_moe_forward.1} parent=39 // pred_fallthru
          _
        %s340 = sand.u32 %s34, 1
        %s341 = scalar_lea.sflag [#allocation9], %s340
        %s342 = sand.u32 %s117, 1
        %s343 = smul.addr %s342, 128
        %s344 = scalar_lea.vmem [#allocation8], %s343
        // Predicated region
        $region45: #{mixtral_moe_forward.1} parent=39 // pred_check
          %p345 = pneg %p130
        $region46: #{mixtral_moe_forward.1} parent=39 // pred_check_branch
          %347 = sbr.rel (%p345) target = $region48
        $region47: #{mixtral_moe_forward.1} parent=39 // pred_region
          %349 = dma.done %s341, 2048
        $region48: #{mixtral_moe_forward.1} parent=39 // pred_fallthru
          _
        %s350 = sand.u32 %s34, 1
        %s351 = scalar_lea.sflag [#allocation9], %s350
        %s352 = sand.u32 %s145, 1
        %s353 = smul.addr %s352, 128
        %s354 = scalar_lea.vmem [#allocation10], %s353
        // Predicated region
        $region49: #{mixtral_moe_forward.1} parent=39 // pred_check
          %p355 = pneg %p158
        $region50: #{mixtral_moe_forward.1} parent=39 // pred_check_branch
          %357 = sbr.rel (%p355) target = $region52
        $region51: #{mixtral_moe_forward.1} parent=39 // pred_region
          %359 = dma.done %s351, 2048
        $region52: #{mixtral_moe_forward.1} parent=39 // pred_fallthru
          _
        %s360 = smul.u32 2, %s39
        %p361 = scmp.lt.s32.totalorder %s360, 3
        %s362 = scalar_select %p361, %s360, 3
        %s363 = smul.addr %s362, 8
        %s364 = scalar_lea.vmem %s1, %s363
        %p365 = pneg %p74
        %p366 = pneg %p71
        %s367 = sand.u32 %s89, 1
        %s368 = scalar_lea.sflag [#allocation6], %s367
        %s369 = sand.u32 %s89, 1
        %s370 = smul.addr %s369, 128
        %s371 = scalar_lea.vmem [#allocation5], %s370
        %p372 = pneg %p102
        %p373 = pneg %p99
        %s374 = sand.u32 %s34, 1
        %s375 = scalar_lea.sflag [#allocation9], %s374
        %s376 = sand.u32 %s117, 1
        %s377 = smul.addr %s376, 128
        %s378 = scalar_lea.vmem [#allocation8], %s377
        %p379 = pneg %p130
        %p380 = pneg %p127
        %s381 = sand.u32 %s34, 1
        %s382 = scalar_lea.sflag [#allocation9], %s381
        %s383 = sand.u32 %s145, 1
        %s384 = smul.addr %s383, 128
        %s385 = scalar_lea.vmem [#allocation10], %s384
        %p386 = pneg %p158
        %p387 = pneg %p155
        %s388 = smul.u32 2, %s39
        %p389 = scmp.lt.s32.totalorder %s40, 7
        %s390 = scalar_select %p389, %s40, 7
        %p391 = scmp.lt.s32.totalorder %s388, 3
        %s392 = scalar_select %p391, %s388, 3
        %s393 = smul.addr %s390, 4
        %s394 = sadd.s32 %s392, %s393
        %s395 = smul.addr %s394, 8
        %s396 = scalar_lea.vmem %s5, %s395
        %p397 = pneg %p186
        %p398 = pneg %p183
        %p399 = pneg %p212
        %p400 = pneg %p209
        %s401 = sand.u32 %s199, 1
        %s402 = scalar_lea.sflag [#allocation7], %s401
        %s403 = sand.u32 %s199, 1
        %s404 = smul.addr %s403, 16
        %s405 = scalar_lea.vmem [#allocation11], %s404
        %s406 = smul.u32 2, %s39
        %p407 = scmp.lt.s32.totalorder %s406, 3
        %s408 = scalar_select %p407, %s406, 3
        %s409 = smul.addr %s408, 8
        %s410 = scalar_lea.vmem %s1, %s409
        %s411 = smul.u32 2, %s39
        %s412 = smul.u32 16, %s41
        %s413 = smul.u32 2, %s39
        %p414 = scmp.lt.s32.totalorder %s40, 7
        %s415 = scalar_select %p414, %s40, 7
        %p416 = scmp.lt.s32.totalorder %s413, 3
        %s417 = scalar_select %p416, %s413, 3
        %s418 = smul.addr %s415, 4
        %s419 = sadd.s32 %s417, %s418
        %s420 = smul.addr %s419, 8
        %s421 = scalar_lea.vmem %s5, %s420
        %s422 = smul.u32 2, %s39
        %s423 = smul.u32 2, %s39
        %p424 = scmp.eq.s32.totalorder %s40, 0
        %p425 = scmp.eq.s32.totalorder %s41, 0
        %p426 = pnand %p424, %p425
        %p427 = pneg %p426
        // Predicated region
        $region53: #{mixtral_moe_forward.1} parent=39 // pred_check
          _
        $region54: #{mixtral_moe_forward.1} parent=39 // pred_check_branch
          %429 = sbr.rel (%p426) target = $region56
        $region55: #{mixtral_moe_forward.1} parent=39 // pred_region
          %430 = vst [vmem:[#allocation2] sm:$0xff] 0.0
          %431 = vst [vmem:[#allocation2 + $0x8] sm:$0xff] 0.0
        $region56: #{mixtral_moe_forward.1} parent=39 // pred_fallthru
          _
        %s432 = smul.u32 %s39, 8
        %s433 = sadd.s32 %s432, %s40
        %s434 = sld [smem:[#allocation4 + %s433]]
        %p435 = scmp.ne.s32.totalorder %s434, 0
        // Predicated region
        $region57: #{mixtral_moe_forward.1} parent=39 // pred_check
          %p436 = pneg %p435
        $region58: #{mixtral_moe_forward.1} parent=39 // pred_check_branch
          %438 = sbr.rel (%p436) target = $region60
        $region59: #{mixtral_moe_forward.1} parent=39 // pred_region
          %v439 = vld [vmem:[%s410] sm:$0xff]
          %v440 = vld [vmem:[%s410 + $0x8] sm:$0xff]
          %v441 = vld [vmem:[%s421] sm:$0xff]
          %v442 = vld [vmem:[%s421 + $0x8] sm:$0xff]
          %v443 = vld [vmem:[%s334] sm:$0xff]
          %v444 = vld [vmem:[%s334 + $0x8] sm:$0xff]
          %v445 = vld [vmem:[%s334 + $0x10] sm:$0xff]
          %v446 = vld [vmem:[%s334 + $0x18] sm:$0xff]
          %v447 = vld [vmem:[%s334 + $0x20] sm:$0xff]
          %v448 = vld [vmem:[%s334 + $0x28] sm:$0xff]
          %v449 = vld [vmem:[%s334 + $0x30] sm:$0xff]
          %v450 = vld [vmem:[%s334 + $0x38] sm:$0xff]
          %v451 = vld [vmem:[%s334 + $0x40] sm:$0xff]
          %v452 = vld [vmem:[%s334 + $0x48] sm:$0xff]
          %v453 = vld [vmem:[%s334 + $0x50] sm:$0xff]
          %v454 = vld [vmem:[%s334 + $0x58] sm:$0xff]
          %v455 = vld [vmem:[%s334 + $0x60] sm:$0xff]
          %v456 = vld [vmem:[%s334 + $0x68] sm:$0xff]
          %v457 = vld [vmem:[%s334 + $0x70] sm:$0xff]
          %v458 = vld [vmem:[%s334 + $0x78] sm:$0xff]
          %459 = vmatpush.msra.mxu0 %v458
          %460 = vmatpush.msra.mxu0 %v457
          %461 = vmatpush.msra.mxu0 %v456
          %462 = vmatpush.msra.mxu0 %v455
          %463 = vmatpush.msra.mxu0 %v454
          %464 = vmatpush.msra.mxu0 %v453
          %465 = vmatpush.msra.mxu0 %v452
          %466 = vmatpush.msra.mxu0 %v451
          %467 = vmatpush.msra.mxu0 %v450
          %468 = vmatpush.msra.mxu0 %v449
          %469 = vmatpush.msra.mxu0 %v448
          %470 = vmatpush.msra.mxu0 %v447
          %471 = vmatpush.msra.mxu0 %v446
          %472 = vmatpush.msra.mxu0 %v445
          %473 = vmatpush.msra.mxu0 %v444
          %474 = vmatpush.msra.mxu0 %v443
          %475 = vmatmul.f32.gmra.mxu0 %v439
          %v476 = vpop.f32.mrf.mxu0
          %v477 = vadd.f32 0.0, %v476
          %478 = vmatmul.f32.gmra.mxu0 %v440
          %v479 = vpop.f32.mrf.mxu0
          %v480 = vadd.f32 0.0, %v479
          %481 = vdwg.mxu0
          %v482 = vld [vmem:[%s344] sm:$0xff]
          %v483 = vld [vmem:[%s344 + $0x8] sm:$0xff]
          %v484 = vld [vmem:[%s344 + $0x10] sm:$0xff]
          %v485 = vld [vmem:[%s344 + $0x18] sm:$0xff]
          %v486 = vld [vmem:[%s344 + $0x20] sm:$0xff]
          %v487 = vld [vmem:[%s344 + $0x28] sm:$0xff]
          %v488 = vld [vmem:[%s344 + $0x30] sm:$0xff]
          %v489 = vld [vmem:[%s344 + $0x38] sm:$0xff]
          %v490 = vld [vmem:[%s344 + $0x40] sm:$0xff]
          %v491 = vld [vmem:[%s344 + $0x48] sm:$0xff]
          %v492 = vld [vmem:[%s344 + $0x50] sm:$0xff]
          %v493 = vld [vmem:[%s344 + $0x58] sm:$0xff]
          %v494 = vld [vmem:[%s344 + $0x60] sm:$0xff]
          %v495 = vld [vmem:[%s344 + $0x68] sm:$0xff]
          %v496 = vld [vmem:[%s344 + $0x70] sm:$0xff]
          %v497 = vld [vmem:[%s344 + $0x78] sm:$0xff]
          %498 = vmatpush.msra.mxu0 %v497
          %499 = vmatpush.msra.mxu0 %v496
          %500 = vmatpush.msra.mxu0 %v495
          %501 = vmatpush.msra.mxu0 %v494
          %502 = vmatpush.msra.mxu0 %v493
          %503 = vmatpush.msra.mxu0 %v492
          %504 = vmatpush.msra.mxu0 %v491
          %505 = vmatpush.msra.mxu0 %v490
          %506 = vmatpush.msra.mxu0 %v489
          %507 = vmatpush.msra.mxu0 %v488
          %508 = vmatpush.msra.mxu0 %v487
          %509 = vmatpush.msra.mxu0 %v486
          %510 = vmatpush.msra.mxu0 %v485
          %511 = vmatpush.msra.mxu0 %v484
          %512 = vmatpush.msra.mxu0 %v483
          %513 = vmatpush.msra.mxu0 %v482
          %514 = vmatmul.f32.gmra.mxu0 %v439
          %v515 = vpop.f32.mrf.mxu0
          %v516 = vadd.f32 0.0, %v515
          %517 = vmatmul.f32.gmra.mxu0 %v440
          %v518 = vpop.f32.mrf.mxu0
          %v519 = vadd.f32 0.0, %v518
          %520 = vdwg.mxu0
          %v521 = vxor.u32 %v477, 2147483648
          %v522 = vxor.u32 %v480, 2147483648
          %v523 = vmul.f32 %v521, 1.442695
          %v524 = vpow.pop %v523
          %v525 = vmul.f32 %v522, 1.442695
          %v526 = vpow.pop %v525
          %v527 = vadd.f32 %v524, 1.0
          %v528 = vadd.f32 %v526, 1.0
          %v529 = vrcp.pop %v527
          %v530 = vmul.f32 %v527, %v529
          %v531 = vsub.f32 1.0, %v530
          %v532 = vmul.f32 %v529, %v531
          %v533 = vadd.f32 %v529, %v532
          %vm534 = vweird.f32 %v527
          %vm535 = vweird.f32 %v529
          %vm536 = vmor %vm534, %vm535
          %v537 = vsel %vm536, %v529, %v533
          %v538 = vand.u32 2147483647, %v527
          %vm539 = vcmp.eq.f32.partialorder %v538, 8.507059e+37
          %v540 = vand.u32 %v527, 2147483648
          %v541 = vor.u32 1.1754944e-38, %v540
          %v542 = vsel %vm539, %v541, %v537
          %v543 = vmul.f32 1.0, %v542
          %v544 = vrcp.pop %v528
          %v545 = vmul.f32 %v528, %v544
          %v546 = vsub.f32 1.0, %v545
          %v547 = vmul.f32 %v544, %v546
          %v548 = vadd.f32 %v544, %v547
          %vm549 = vweird.f32 %v528
          %vm550 = vweird.f32 %v544
          %vm551 = vmor %vm549, %vm550
          %v552 = vsel %vm551, %v544, %v548
          %v553 = vand.u32 2147483647, %v528
          %vm554 = vcmp.eq.f32.partialorder %v553, 8.507059e+37
          %v555 = vand.u32 %v528, 2147483648
          %v556 = vor.u32 1.1754944e-38, %v555
          %v557 = vsel %vm554, %v556, %v552
          %v558 = vmul.f32 1.0, %v557
          %v559 = vmul.f32 %v477, %v543
          %v560 = vmul.f32 %v480, %v558
          %v561 = vmul.f32 %v559, %v516
          %v562 = vmul.f32 %v560, %v519
          %564 = vset.pattern.permute.xlu0 0
          %565 = vperm.xlu0 %564, %v441
          %v566 = vpop.permute.xlu0 %565
          %569 = vset.pattern.permute.xlu0 0
          %570 = vperm.xlu0 %569, %v442
          %v571 = vpop.permute.xlu0 %570
          %v573 = vmul.f32 %v561, %v566
          %v574 = vmul.f32 %v562, %v571
          %v575 = vld [vmem:[#allocation2] sm:$0xff]
          %v576 = vld [vmem:[#allocation2 + $0x8] sm:$0xff]
          %v577 = vld [vmem:[%s354] sm:$0xff]
          %v578 = vld [vmem:[%s354 + $0x8] sm:$0xff]
          %v579 = vld [vmem:[%s354 + $0x10] sm:$0xff]
          %v580 = vld [vmem:[%s354 + $0x18] sm:$0xff]
          %v581 = vld [vmem:[%s354 + $0x20] sm:$0xff]
          %v582 = vld [vmem:[%s354 + $0x28] sm:$0xff]
          %v583 = vld [vmem:[%s354 + $0x30] sm:$0xff]
          %v584 = vld [vmem:[%s354 + $0x38] sm:$0xff]
          %v585 = vld [vmem:[%s354 + $0x40] sm:$0xff]
          %v586 = vld [vmem:[%s354 + $0x48] sm:$0xff]
          %v587 = vld [vmem:[%s354 + $0x50] sm:$0xff]
          %v588 = vld [vmem:[%s354 + $0x58] sm:$0xff]
          %v589 = vld [vmem:[%s354 + $0x60] sm:$0xff]
          %v590 = vld [vmem:[%s354 + $0x68] sm:$0xff]
          %v591 = vld [vmem:[%s354 + $0x70] sm:$0xff]
          %v592 = vld [vmem:[%s354 + $0x78] sm:$0xff]
          %593 = vmatpush.msra.mxu0 %v592
          %594 = vmatpush.msra.mxu0 %v591
          %595 = vmatpush.msra.mxu0 %v590
          %596 = vmatpush.msra.mxu0 %v589
          %597 = vmatpush.msra.mxu0 %v588
          %598 = vmatpush.msra.mxu0 %v587
          %599 = vmatpush.msra.mxu0 %v586
          %600 = vmatpush.msra.mxu0 %v585
          %601 = vmatpush.msra.mxu0 %v584
          %602 = vmatpush.msra.mxu0 %v583
          %603 = vmatpush.msra.mxu0 %v582
          %604 = vmatpush.msra.mxu0 %v581
          %605 = vmatpush.msra.mxu0 %v580
          %606 = vmatpush.msra.mxu0 %v579
          %607 = vmatpush.msra.mxu0 %v578
          %608 = vmatpush.msra.mxu0 %v577
          %609 = vmatmul.f32.gmra.mxu0 %v573
          %v610 = vpop.f32.mrf.mxu0
          %v611 = vadd.f32 0.0, %v610
          %612 = vmatmul.f32.gmra.mxu0 %v574
          %v613 = vpop.f32.mrf.mxu0
          %v614 = vadd.f32 0.0, %v613
          %615 = vdwg.mxu0
          %v616 = vadd.f32 %v575, %v611
          %v617 = vadd.f32 %v576, %v614
          %618 = vst [vmem:[#allocation2] sm:$0xff] %v616
          %619 = vst [vmem:[#allocation2 + $0x8] sm:$0xff] %v617
        $region60: #{mixtral_moe_forward.1} parent=39 // pred_fallthru
          _
        %p620 = scmp.eq.s32.totalorder %s40, 7
        %p621 = scmp.eq.s32.totalorder %s41, 1
        %p622 = pnand %p620, %p621
        %p623 = pneg %p622
        // Predicated region
        $region61: #{mixtral_moe_forward.1} parent=39 // pred_check
          _
        $region62: #{mixtral_moe_forward.1} parent=39 // pred_check_branch
          %625 = sbr.rel (%p622) target = $region64
        $region63: #{mixtral_moe_forward.1} parent=39 // pred_region
          %v626 = vld [vmem:[#allocation2] sm:$0xff]
          %v627 = vld [vmem:[#allocation2 + $0x8] sm:$0xff]
          %628 = vst [vmem:[%s405] sm:$0xff] %v626
          %629 = vst [vmem:[%s405 + $0x8] sm:$0xff] %v627
        $region64: #{mixtral_moe_forward.1} parent=39 // pred_fallthru
          _
        %s630 = sand.u32 %s199, 1
        %s631 = scalar_lea.sflag [#allocation7], %s630
        %s632 = sand.u32 %s199, 1
        %s633 = smul.addr %s632, 16
        %s634 = scalar_lea.vmem [#allocation11], %s633
        // Predicated region
        $region65: #{mixtral_moe_forward.1} parent=39 // pred_check
          %p635 = pneg %p209
        $region66: #{mixtral_moe_forward.1} parent=39 // pred_check_branch
          %637 = sbr.rel (%p635) target = $region68
        $region67: #{mixtral_moe_forward.1} parent=39 // pred_region
          %s638 = smul.u32 2, %s39
          %640 = vsyncadd %s631, 0
          %s641 = smul.addr %s638, 8
          %s642 = scalar_lea.hbm %s6, %s641
          %s643 = sshll.u32 %s634, 4
          %s644 = int_to_ptr.vmem [resolvable:$true] %s643
          %s645 = sshll.u32 %s642, 4
          %s646 = int_to_ptr.hbm [resolvable:$true] %s645
          %651 = dma.vmem_to_hbm [thread:$0]  %s644, 256, %s646, %s631, 128, 128, 8
        $region68: #{mixtral_moe_forward.1} parent=39 // pred_fallthru
          _
      $region40: #{mixtral_moe_forward.1} parent=5 // pred_fallthru
        _
      %p652 = scmp.le.s32.totalorder 2, %s29
      // Predicated region
      $region69: #{mixtral_moe_forward.1} parent=5 // pred_check
        %p653 = pneg %p652
      $region70: #{mixtral_moe_forward.1} parent=5 // pred_check_branch
        %655 = sbr.rel (%p653) target = $region72
      $region71: #{mixtral_moe_forward.1} parent=5 // pred_region
        %s656 = ssub.s32 %s29, 2
        // Predicated region
        $region73: #{mixtral_moe_forward.1} parent=71 // pred_check
          %p657 = pneg %p215
        $region74: #{mixtral_moe_forward.1} parent=71 // pred_check_branch
          %659 = sbr.rel (%p657) target = $region76
        $region75: #{mixtral_moe_forward.1} parent=71 // pred_region
          %s660 = sand.u32 %s200, 1
          %s661 = scalar_lea.sflag [#allocation7], %s660
          %s662 = sand.u32 %s200, 1
          %s663 = smul.addr %s662, 16
          %s664 = scalar_lea.vmem [#allocation11], %s663
          %666 = dma.done %s661, 256
        $region76: #{mixtral_moe_forward.1} parent=71 // pred_fallthru
          _
      $region72: #{mixtral_moe_forward.1} parent=5 // pred_fallthru
        _
    $region6: #{mixtral_moe_forward.1} parent=1 // loop_footer
      %s33 = sadd.s32 1, %s29
    $region7: #{mixtral_moe_forward.1} parent=1 // loop_footer_branch
      %28 = sbr.rel target = $region3
    $region8: #{mixtral_moe_forward.1} parent=1 // loop_exit
      _
    %667 = vsyncpa [#allocation6], 1
    %s668 = scalar_lea.sflag [#allocation6], 1
    %669 = vsyncpa %s668, 1
    %670 = vsyncpa [#allocation9], 1
    %s671 = scalar_lea.sflag [#allocation9], 1
    %672 = vsyncpa %s671, 1
    %673 = vsyncpa [#allocation7], 1
    %s674 = scalar_lea.sflag [#allocation7], 1
    %675 = vsyncpa %s674, 1

</llo_original>
